<compile_context>
chip_gen: v6e
topology: v6e:2x2x1
jax: 0.10.0
libtpu: 0.0.40
codegen_flags: <defaults>
</compile_context>

<pallas_src>
import jax
import jax.numpy as jnp
from jax.experimental import pallas as pl
from jax.experimental.pallas import tpu as pltpu


# ----------------------------------------------------------------------------
# Pallas kernel
# ----------------------------------------------------------------------------
def running_norm_kernel(x_ref, p_ref, o_ref):
    # p_ref rows: 0 = scale = weight / (sqrt(running_var) + eps)
    #             1 = shift = bias   - running_mean * scale
    x = x_ref[...].astype(jnp.float32)        # (bt, dt) streamed tile
    scale = p_ref[0:1, :]                     # (1, dt) resident
    shift = p_ref[1:2, :]                     # (1, dt) resident
    o_ref[...] = (x * scale + shift).astype(o_ref.dtype)


# ----------------------------------------------------------------------------
# Wrapper
# ----------------------------------------------------------------------------
def running_norm_forward(x, running_mean, running_var, weight, bias, *,
                         eps=1e-5, batch_tile=1024, feature_tile=1024):
    """Eval-mode RunningNorm forward.  x: (N, D)."""
    N, D = x.shape
    out_dtype = x.dtype

    # Fold the per-feature math once on the tiny (1, D) rows (negligible XLA
    # work outside the streamed kernel):
    #   (x - mean) / (sqrt(var) + eps) * w + b  ==  x * scale + shift
    rm = jnp.reshape(running_mean, (1, D)).astype(jnp.float32)
    rv = jnp.reshape(running_var, (1, D)).astype(jnp.float32)
    w = jnp.reshape(weight, (1, D)).astype(jnp.float32)
    b = jnp.reshape(bias, (1, D)).astype(jnp.float32)
    scale = w / (jnp.sqrt(rv) + jnp.float32(eps))
    shift = b - rm * scale
    packed = jnp.concatenate([scale, shift], axis=0)        # (2, D) f32

    # Tile sizes: full extent if it fits, else a multiple of (8, 128) so the
    # BlockSpec tiling constraint holds (grid handles the ragged remainder).
    if N <= batch_tile:
        bt = N
    else:
        bt = max(8, (batch_tile // 8) * 8)
    if D <= feature_tile:
        dt = D
    else:
        dt = max(128, (feature_tile // 128) * 128)

    grid = (pl.cdiv(N, bt), pl.cdiv(D, dt))

    # VMEM budget: double-buffered x + out blocks + resident params + headroom.
    blk_in = bt * dt * jnp.dtype(x.dtype).itemsize
    blk_out = bt * dt * jnp.dtype(out_dtype).itemsize
    blk_p = 2 * dt * 4
    needed = 2 * (blk_in + blk_out + blk_p)
    vmem_limit = min(max(int(needed * 1.5) + (4 << 20), 32 * 1024 * 1024),
                     96 * 1024 * 1024)

    return pl.pallas_call(
        running_norm_kernel,
        out_shape=jax.ShapeDtypeStruct((N, D), out_dtype),
        grid_spec=pltpu.PrefetchScalarGridSpec(
            num_scalar_prefetch=0,
            grid=grid,
            in_specs=[
                pl.BlockSpec((bt, dt), lambda i, j: (i, j)),   # x (streamed)
                pl.BlockSpec((2, dt), lambda i, j: (0, j)),    # scale/shift
            ],
            out_specs=pl.BlockSpec((bt, dt), lambda i, j: (i, j)),
        ),
        compiler_params=pltpu.CompilerParams(
            dimension_semantics=("parallel", "parallel"),
            vmem_limit_bytes=vmem_limit),
    )(x, packed)


# ----------------------------------------------------------------------------
# Pure-JAX reference (exact PyTorch forward formula) + demo
# ----------------------------------------------------------------------------
def reference_forward(x, running_mean, running_var, weight, bias, eps=1e-5):
    std = jnp.sqrt(running_var) + eps
    return (x - running_mean) / std * weight + bias


if __name__ == "__main__":
    # Small demo: N deliberately NOT a multiple of the batch tile so the
    # pl.cdiv ragged-last-block path is exercised; D is a multiple of 128 so
    # stores stay lane-dense.
    N, D = 500, 256
    BT = 256                  # grid = (2, 1): two batch tiles, one feature tile

    key = jax.random.PRNGKey(0)
    kx, km, kv, kw, kb = jax.random.split(key, 5)
    x = jax.random.normal(kx, (N, D), jnp.float32)
    # Non-trivial buffers / params to exercise the full formula (the module
    # inits weight=1, bias=0, mean=0, var=1, but these get trained/updated).
    running_mean = 0.1 * jax.random.normal(km, (1, D), jnp.float32)
    running_var = 1.0 + 0.1 * jax.random.uniform(kv, (1, D), jnp.float32)
    weight = 1.0 + 0.05 * jax.random.normal(kw, (1, D), jnp.float32)
    bias = 0.05 * jax.random.normal(kb, (1, D), jnp.float32)

    y = running_norm_forward(x, running_mean, running_var, weight, bias,
                             eps=1e-5, batch_tile=BT)
    y = jax.block_until_ready(y)

    y_ref = jax.block_until_ready(
        reference_forward(x, running_mean, running_var, weight, bias, eps=1e-5))

    assert y.shape == (N, D)
    assert jnp.allclose(y, y_ref, rtol=1e-5, atol=1e-5), float(
        jnp.max(jnp.abs(y - y_ref)))
    print("KERNEL_OK")
</pallas_src>

<mosaic_0001>
module attributes {stable_mosaic.version = 11 : i64} {
  func.func @running_norm_kernel(%arg0: i32, %arg1: i32, %arg2: memref<256x256xf32, #tpu.memory_space<vmem>>, %arg3: memref<2x256xf32, #tpu.memory_space<vmem>>, %arg4: memref<256x256xf32, #tpu.memory_space<vmem>>) attributes {dimension_semantics = [#tpu.dimension_semantics<parallel>, #tpu.dimension_semantics<parallel>], iteration_bounds = array<i64: 2, 1>, scalar_prefetch = 0 : i64, scratch_operands = 0 : i64, tpu.core_type = #tpu.core_type<tc>, window_params = [{transform_indices = @transform_0, window_bounds = array<i64: 256, 256>}, {transform_indices = @transform_1, window_bounds = array<i64: 2, 256>}, {transform_indices = @transform_2, window_bounds = array<i64: 256, 256>}]} {
    %c0 = arith.constant 0 : index
    %c0_0 = arith.constant 0 : index
    %0 = vector.load %arg2[%c0, %c0_0] : memref<256x256xf32, #tpu.memory_space<vmem>>, vector<256x256xf32>
    %c0_1 = arith.constant 0 : index
    %c0_2 = arith.constant 0 : index
    %1 = vector.load %arg3[%c0_1, %c0_2] : memref<2x256xf32, #tpu.memory_space<vmem>>, vector<1x256xf32>
    %c1 = arith.constant 1 : index
    %c0_3 = arith.constant 0 : index
    %2 = vector.load %arg3[%c1, %c0_3] : memref<2x256xf32, #tpu.memory_space<vmem>>, vector<1x256xf32>
    %3 = vector.broadcast %1 : vector<1x256xf32> to vector<256x256xf32>
    %4 = arith.mulf %0, %3 : vector<256x256xf32>
    %5 = vector.broadcast %2 : vector<1x256xf32> to vector<256x256xf32>
    %6 = arith.addf %4, %5 : vector<256x256xf32>
    %c0_4 = arith.constant 0 : index
    %c0_5 = arith.constant 0 : index
    %7 = vector.load %arg4[%c0_4, %c0_5] : memref<256x256xf32, #tpu.memory_space<vmem>>, vector<256x256xf32>
    tpu.vector_store %arg4[%c0_4, %c0_5], %6 {strides = array<i32>} : memref<256x256xf32, #tpu.memory_space<vmem>>, vector<256x256xf32>,
    return
  }
  func.func @transform_0(%arg0: i32, %arg1: i32) -> (i32, i32) {
    %c0_i32 = arith.constant 0 : i32
    return %arg0, %arg1 : i32, i32
  }
  func.func @transform_1(%arg0: i32, %arg1: i32) -> (i32, i32) {
    %c0_i32 = arith.constant 0 : i32
    %c0_i32_0 = arith.constant 0 : i32
    return %c0_i32, %arg1 : i32, i32
  }
  func.func @transform_2(%arg0: i32, %arg1: i32) -> (i32, i32) {
    %c0_i32 = arith.constant 0 : i32
    return %arg0, %arg1 : i32, i32
  }
}

</mosaic_0001>

<llo_original>
// kernel: tpu_custom_call.1
$region0: #{tpu_custom_call.1}
  #allocation0 [shape = 'u32[]', space=smem, size = 0x4, offset = 0x4, fixed_abs, tag = 'smem constant byte address 0x4 - core index']
  #allocation1 [shape = 'u32[144,128]{1,0:T(1,128)}', space=vmem, size = 0x12000, scoped, tag = 'internal scratch']
  %s0 = inlined_call_operand.hbm [shape: f32[500,256], index: 0, kind: input, shape index: {}]
  %s1 = inlined_call_operand.hbm [shape: f32[2,256], index: 1, kind: input, shape index: {}]
  %s2 = inlined_call_operand.hbm [shape: f32[500,256], index: 2, kind: output, shape index: {}]
  %s3 = sld [smem:[#allocation0]]
  $region49: #{tpu_custom_call.1} parent=0
    _
  %s5 = ssub.s32 1, %s3
  %s6 = scalar_select 0, %s5, %s3
  $region1: #{tpu_custom_call.1} parent=0
    #allocation2 [shape = 'u8[524288]{0}', space=vmem, size = 0x80000, scoped, tag = 'input window, operand 0']
    #allocation3 [shape = 's32[2]{0}', space=sflag, size = 0x8, scoped, tag = 'scoped memory for tpu_custom_call.1']
    #allocation4 [shape = 's32[2]{0}', space=sflag, size = 0x8, scoped, tag = 'scoped memory for tpu_custom_call.1']
    #allocation5 [shape = 'u8[2048]{0}', space=vmem, size = 0x800, scoped, tag = 'input window, operand 1, single buffered']
    #allocation6 [shape = 's32[1]{0}', space=sflag, size = 0x4, scoped, tag = 'scoped memory for tpu_custom_call.1']
    #allocation7 [shape = 'u8[524288]{0}', space=vmem, size = 0x80000, scoped, tag = 'output window, operand 0']
    %7 = vsyncpa [#allocation3], 0
    %s8 = scalar_lea.sflag [#allocation3], 1
    %9 = vsyncpa %s8, 0
    %10 = vsyncpa [#allocation6], 0
    %11 = vsyncpa [#allocation4], 0
    %s12 = scalar_lea.sflag [#allocation4], 1
    %13 = vsyncpa %s12, 0
    loop: start=0, step=1, limit=4
    $region2: #{tpu_custom_call.1} parent=1 // loop_pre_header
      _
    $region3: #{tpu_custom_call.1} parent=1 // loop_header
      %s15 = sphi 0, %s19
      %p16 = scmp.ge.s32.totalorder %s15, 4
      %s22 = sphi 0, %s34
      %s23 = sphi 0, %s30
      %s24 = sphi 0, %s22
      %s25 = sphi 0, %s23
      %s26 = sphi 0, %s24
      %s27 = sphi 0, %s25
      %s39 = sphi 0, %s41
      %s42 = sphi 0, %s39
      %s43 = sphi 0, %s42
      %s59 = sphi 0, %s43
      %s65 = sphi 0, %s67
      %s68 = sphi 0, %s65
      %s69 = sphi 0, %s68
      %s85 = sphi 0, %s69
      %s93 = sphi 0, %s95
      %s96 = sphi 0, %s93
      %s97 = sphi 0, %s96
      %s113 = sphi 0, %s97
    $region4: #{tpu_custom_call.1} parent=1 // loop_header_branch
      %18 = sbr.rel (%p16) target = $region8
    $region5: #{tpu_custom_call.1} parent=1 // loop_body
      %s20 = ssub.s32 %s15, 1
      %s21 = ssub.s32 %s15, 2
      %s28 = sadd.s32 1, %s23
      %p29 = scmp.ge.s32.totalorder %s28, 1
      %s30 = scalar_select %p29, 0, %s28
      %s31 = sadd.s32 1, %s22
      %s32 = scalar_select %p29, %s31, %s22
      %p33 = scmp.ge.s32.totalorder %s32, 2
      %s34 = scalar_select %p33, 0, %s32
      %s35 = ssub.s32 %s22, %s34
      %s36 = ssub.s32 %s23, %s30
      %s37 = sor.u32 %s35, %s36
      %p38 = scmp.eq.s32.totalorder %s37, 0
      %s40 = sadd.s32 %s39, 1
      %s41 = scalar_select %p38, %s39, %s40
      %p44 = pneg %p38
      %p45 = scmp.eq.s32.totalorder %s15, 1
      %p46 = por %p44, %p45
      %p47 = scmp.ne.s32.totalorder %s39, %s42
      %p48 = scmp.eq.s32.totalorder %s15, 0
      %p49 = por %p47, %p48
      %p50 = scmp.ne.s32.totalorder %s39, %s42
      %p51 = scmp.eq.s32.totalorder %s20, 1
      %p52 = por %p50, %p51
      %p53 = scmp.ne.s32.totalorder %s42, %s43
      %p54 = scmp.eq.s32.totalorder %s20, 0
      %p55 = por %p53, %p54
      %p56 = scmp.ne.s32.totalorder %s42, %s43
      %p57 = scmp.eq.s32.totalorder %s21, 1
      %p58 = por %p56, %p57
      %p60 = scmp.ne.s32.totalorder %s43, %s59
      %p61 = scmp.eq.s32.totalorder %s21, 0
      %p62 = por %p60, %p61
      %s63 = ssub.s32 %s23, %s30
      %p64 = scmp.eq.s32.totalorder %s63, 0
      %s66 = sadd.s32 %s65, 1
      %s67 = scalar_select %p64, %s65, %s66
      %p70 = pneg %p64
      %p71 = scmp.eq.s32.totalorder %s15, 1
      %p72 = por %p70, %p71
      %p73 = scmp.ne.s32.totalorder %s65, %s68
      %p74 = scmp.eq.s32.totalorder %s15, 0
      %p75 = por %p73, %p74
      %p76 = scmp.ne.s32.totalorder %s65, %s68
      %p77 = scmp.eq.s32.totalorder %s20, 1
      %p78 = por %p76, %p77
      %p79 = scmp.ne.s32.totalorder %s68, %s69
      %p80 = scmp.eq.s32.totalorder %s20, 0
      %p81 = por %p79, %p80
      %p82 = scmp.ne.s32.totalorder %s68, %s69
      %p83 = scmp.eq.s32.totalorder %s21, 1
      %p84 = por %p82, %p83
      %p86 = scmp.ne.s32.totalorder %s69, %s85
      %p87 = scmp.eq.s32.totalorder %s21, 0
      %p88 = por %p86, %p87
      %s89 = ssub.s32 %s22, %s34
      %s90 = ssub.s32 %s23, %s30
      %s91 = sor.u32 %s89, %s90
      %p92 = scmp.eq.s32.totalorder %s91, 0
      %s94 = sadd.s32 %s93, 1
      %s95 = scalar_select %p92, %s93, %s94
      %p98 = pneg %p92
      %p99 = scmp.eq.s32.totalorder %s15, 1
      %p100 = por %p98, %p99
      %p101 = scmp.ne.s32.totalorder %s93, %s96
      %p102 = scmp.eq.s32.totalorder %s15, 0
      %p103 = por %p101, %p102
      %p104 = scmp.ne.s32.totalorder %s93, %s96
      %p105 = scmp.eq.s32.totalorder %s20, 1
      %p106 = por %p104, %p105
      %p107 = scmp.ne.s32.totalorder %s96, %s97
      %p108 = scmp.eq.s32.totalorder %s20, 0
      %p109 = por %p107, %p108
      %p110 = scmp.ne.s32.totalorder %s96, %s97
      %p111 = scmp.eq.s32.totalorder %s21, 1
      %p112 = por %p110, %p111
      %p114 = scmp.ne.s32.totalorder %s97, %s113
      %p115 = scmp.eq.s32.totalorder %s21, 0
      %p116 = por %p114, %p115
      %p117 = scmp.le.s32.totalorder 1, %s15
      %p118 = scmp.lt.s32.totalorder %s15, 3
      %p119 = pnand %p117, %p118
      %p120 = pneg %p119
      // Predicated region
      $region9: #{tpu_custom_call.1} parent=5 // pred_check
        _
      $region10: #{tpu_custom_call.1} parent=5 // pred_check_branch
        %122 = sbr.rel (%p119) target = $region12
      $region11: #{tpu_custom_call.1} parent=5 // pred_region
        %s123 = ssub.s32 %s15, 1
        // Predicated region
        $region13: #{tpu_custom_call.1} parent=11 // pred_check
          %p124 = pneg %p81
        $region14: #{tpu_custom_call.1} parent=11 // pred_check_branch
          %126 = sbr.rel (%p124) target = $region16
        $region15: #{tpu_custom_call.1} parent=11 // pred_region
          %s127 = smul.u32 2, %s25
          %s129 = ssub.s32 64, 64
          %130 = vsyncadd [#allocation6], %s129
          %s131 = smul.addr %s127, 32
          %s132 = scalar_lea.hbm %s1, %s131
          %s134 = sshll.u32 [#allocation5], 4
          %s135 = int_to_ptr.vmem [resolvable:$true] %s134
          %137 = dma.hbm_to_vmem [thread:$0]  %s132, 64, %s135, [#allocation6]
        $region16: #{tpu_custom_call.1} parent=11 // pred_fallthru
          _
      $region12: #{tpu_custom_call.1} parent=5 // pred_fallthru
        _
      %p138 = scmp.lt.s32.totalorder %s15, 2
      // Predicated region
      $region17: #{tpu_custom_call.1} parent=5 // pred_check
        %p139 = pneg %p138
      $region18: #{tpu_custom_call.1} parent=5 // pred_check_branch
        %141 = sbr.rel (%p139) target = $region20
      $region19: #{tpu_custom_call.1} parent=5 // pred_region
        // Predicated region
        $region21: #{tpu_custom_call.1} parent=19 // pred_check
          %p142 = pneg %p49
        $region22: #{tpu_custom_call.1} parent=19 // pred_check_branch
          %144 = sbr.rel (%p142) target = $region24
        $region23: #{tpu_custom_call.1} parent=19 // pred_region
          %s145 = sand.u32 %s39, 1
          %s146 = scalar_lea.sflag [#allocation3], %s145
          %s147 = sand.u32 %s39, 1
          %s148 = smul.addr %s147, 512
          %s149 = scalar_lea.vmem [#allocation2], %s148
          %s150 = smul.u32 32, %s22
          %s151 = smul.u32 2, %s23
          %s152 = ssub.s32 63, %s150
          %p153 = scmp.lt.s32.totalorder %s152, 32
          %s154 = scalar_select %p153, %s152, 32
          %s155 = smul.u32 128, %s154
          %s156 = smul.u32 %s155, 2
          %s158 = ssub.s32 8192, %s156
          %159 = vsyncadd %s146, %s158
          %p160 = scmp.ne.s32.totalorder 0, %s156
          %s161 = smul.addr %s150, 2
          %s162 = sadd.s32 %s151, %s161
          %s163 = smul.addr %s162, 128
          %s164 = scalar_lea.hbm %s0, %s163
          %s165 = smul.u32 16, %s154
          %s166 = sshll.u32 %s149, 4
          %s167 = int_to_ptr.vmem [resolvable:$true] %s166
          %s168 = sshll.u32 %s165, 4
          %172 = dma.hbm_to_vmem [thread:$0]  (%p160), %s164, %s168, %s167, %s146, 256, 256, 16
        $region24: #{tpu_custom_call.1} parent=19 // pred_fallthru
          _
      $region20: #{tpu_custom_call.1} parent=5 // pred_fallthru
        _
      %p173 = scmp.le.s32.totalorder 1, %s15
      %p174 = scmp.lt.s32.totalorder %s15, 3
      %p175 = pnand %p173, %p174
      %p176 = pneg %p175
      // Predicated region
      $region25: #{tpu_custom_call.1} parent=5 // pred_check
        _
      $region26: #{tpu_custom_call.1} parent=5 // pred_check_branch
        %178 = sbr.rel (%p175) target = $region28
      $region27: #{tpu_custom_call.1} parent=5 // pred_region
        %s179 = ssub.s32 %s15, 1
        %s180 = sand.u32 %s42, 1
        %s181 = scalar_lea.sflag [#allocation3], %s180
        %s182 = sand.u32 %s42, 1
        %s183 = smul.addr %s182, 512
        %s184 = scalar_lea.vmem [#allocation2], %s183
        // Predicated region
        $region29: #{tpu_custom_call.1} parent=27 // pred_check
          %p185 = pneg %p55
        $region30: #{tpu_custom_call.1} parent=27 // pred_check_branch
          %187 = sbr.rel (%p185) target = $region32
        $region31: #{tpu_custom_call.1} parent=27 // pred_region
          %188 = dma.done %s181, 8192
        $region32: #{tpu_custom_call.1} parent=27 // pred_fallthru
          _
        // Predicated region
        $region33: #{tpu_custom_call.1} parent=27 // pred_check
          %p189 = pneg %p81
        $region34: #{tpu_custom_call.1} parent=27 // pred_check_branch
          %191 = sbr.rel (%p189) target = $region36
        $region35: #{tpu_custom_call.1} parent=27 // pred_region
          %192 = dma.done [#allocation6], 64
        $region36: #{tpu_custom_call.1} parent=27 // pred_fallthru
          _
        %s193 = sand.u32 %s42, 1
        %s194 = scalar_lea.sflag [#allocation3], %s193
        %s195 = sand.u32 %s42, 1
        %s196 = smul.addr %s195, 512
        %s197 = scalar_lea.vmem [#allocation2], %s196
        %p198 = pneg %p55
        %p199 = pneg %p52
        %p200 = pneg %p81
        %p201 = pneg %p78
        %p202 = pneg %p109
        %p203 = pneg %p106
        %s204 = sand.u32 %s96, 1
        %s205 = scalar_lea.sflag [#allocation4], %s204
        %s206 = sand.u32 %s96, 1
        %s207 = smul.addr %s206, 512
        %s208 = scalar_lea.vmem [#allocation7], %s207
        %s209 = smul.u32 32, %s24
        %s210 = smul.u32 2, %s25
        %s211 = ssub.s32 63, %s209
        %p212 = scmp.lt.s32.totalorder %s211, 32
        %s213 = scalar_select %p212, %s211, 32
        %s214 = smul.u32 128, %s213
        %s215 = smul.u32 %s214, 2
        %s216 = smul.u32 2, %s25
        %s217 = smul.u32 32, %s24
        %s218 = smul.u32 2, %s25
        %s219 = ssub.s32 63, %s217
        %p220 = scmp.lt.s32.totalorder %s219, 32
        %s221 = scalar_select %p220, %s219, 32
        %s222 = smul.u32 128, %s221
        %s223 = smul.u32 %s222, 2
        %v224 = vld [vmem:[%s184] sm:$0xff]
        %v225 = vld [vmem:[%s184 + $0x8] sm:$0xff]
        %v226 = vld [vmem:[%s184 + $0x10] sm:$0xff]
        %v227 = vld [vmem:[%s184 + $0x18] sm:$0xff]
        %v228 = vld [vmem:[%s184 + $0x20] sm:$0xff]
        %v229 = vld [vmem:[%s184 + $0x28] sm:$0xff]
        %v230 = vld [vmem:[%s184 + $0x30] sm:$0xff]
        %v231 = vld [vmem:[%s184 + $0x38] sm:$0xff]
        %v232 = vld [vmem:[%s184 + $0x40] sm:$0xff]
        %v233 = vld [vmem:[%s184 + $0x48] sm:$0xff]
        %v234 = vld [vmem:[%s184 + $0x50] sm:$0xff]
        %v235 = vld [vmem:[%s184 + $0x58] sm:$0xff]
        %v236 = vld [vmem:[%s184 + $0x60] sm:$0xff]
        %v237 = vld [vmem:[%s184 + $0x68] sm:$0xff]
        %v238 = vld [vmem:[%s184 + $0x70] sm:$0xff]
        %v239 = vld [vmem:[%s184 + $0x78] sm:$0xff]
        %v240 = vld [vmem:[%s184 + $0x80] sm:$0xff]
        %v241 = vld [vmem:[%s184 + $0x88] sm:$0xff]
        %v242 = vld [vmem:[%s184 + $0x90] sm:$0xff]
        %v243 = vld [vmem:[%s184 + $0x98] sm:$0xff]
        %v244 = vld [vmem:[%s184 + $0xa0] sm:$0xff]
        %v245 = vld [vmem:[%s184 + $0xa8] sm:$0xff]
        %v246 = vld [vmem:[%s184 + $0xb0] sm:$0xff]
        %v247 = vld [vmem:[%s184 + $0xb8] sm:$0xff]
        %v248 = vld [vmem:[%s184 + $0xc0] sm:$0xff]
        %v249 = vld [vmem:[%s184 + $0xc8] sm:$0xff]
        %v250 = vld [vmem:[%s184 + $0xd0] sm:$0xff]
        %v251 = vld [vmem:[%s184 + $0xd8] sm:$0xff]
        %v252 = vld [vmem:[%s184 + $0xe0] sm:$0xff]
        %v253 = vld [vmem:[%s184 + $0xe8] sm:$0xff]
        %v254 = vld [vmem:[%s184 + $0xf0] sm:$0xff]
        %v255 = vld [vmem:[%s184 + $0xf8] sm:$0xff]
        %v256 = vld [vmem:[%s184 + $0x100] sm:$0xff]
        %v257 = vld [vmem:[%s184 + $0x108] sm:$0xff]
        %v258 = vld [vmem:[%s184 + $0x110] sm:$0xff]
        %v259 = vld [vmem:[%s184 + $0x118] sm:$0xff]
        %v260 = vld [vmem:[%s184 + $0x120] sm:$0xff]
        %v261 = vld [vmem:[%s184 + $0x128] sm:$0xff]
        %v262 = vld [vmem:[%s184 + $0x130] sm:$0xff]
        %v263 = vld [vmem:[%s184 + $0x138] sm:$0xff]
        %v264 = vld [vmem:[%s184 + $0x140] sm:$0xff]
        %v265 = vld [vmem:[%s184 + $0x148] sm:$0xff]
        %v266 = vld [vmem:[%s184 + $0x150] sm:$0xff]
        %v267 = vld [vmem:[%s184 + $0x158] sm:$0xff]
        %v268 = vld [vmem:[%s184 + $0x160] sm:$0xff]
        %v269 = vld [vmem:[%s184 + $0x168] sm:$0xff]
        %v270 = vld [vmem:[%s184 + $0x170] sm:$0xff]
        %v271 = vld [vmem:[%s184 + $0x178] sm:$0xff]
        %v272 = vld [vmem:[%s184 + $0x180] sm:$0xff]
        %v273 = vld [vmem:[%s184 + $0x188] sm:$0xff]
        %v274 = vld [vmem:[%s184 + $0x190] sm:$0xff]
        %v275 = vld [vmem:[%s184 + $0x198] sm:$0xff]
        %v276 = vld [vmem:[%s184 + $0x1a0] sm:$0xff]
        %v277 = vld [vmem:[%s184 + $0x1a8] sm:$0xff]
        %v278 = vld [vmem:[%s184 + $0x1b0] sm:$0xff]
        %v279 = vld [vmem:[%s184 + $0x1b8] sm:$0xff]
        %v280 = vld [vmem:[%s184 + $0x1c0] sm:$0xff]
        %v281 = vld [vmem:[%s184 + $0x1c8] sm:$0xff]
        %v282 = vld [vmem:[%s184 + $0x1d0] sm:$0xff]
        %v283 = vld [vmem:[%s184 + $0x1d8] sm:$0xff]
        %v284 = vld [vmem:[%s184 + $0x1e0] sm:$0xff]
        %v285 = vld [vmem:[%s184 + $0x1e8] sm:$0xff]
        %v286 = vld [vmem:[%s184 + $0x1f0] sm:$0xff]
        %v287 = vld [vmem:[%s184 + $0x1f8] sm:$0xff]
        %v288 = vld [vmem:[#allocation5] ss:$2 sm:$0x3]
        %s289 = scalar_lea.vmem [#allocation5], 1
        %v290 = vld [vmem:[%s289] ss:$2 sm:$0x3]
        %v292 = vlaneseq
        %v293 = vshrl.u32 %v292, 7
        %v294 = vsub.s32 0, %v293
        %v295 = vrot.slane %v288, %v294
        %v296 = vlaneseq
        %v297 = vshrl.u32 %v296, 7
        %v298 = vsub.s32 1, %v297
        %v299 = vrot.slane %v288, %v298
        %v302 = vmul.f32 %v224, %v295
        %v303 = vmul.f32 %v225, %v299
        %v304 = vmul.f32 %v226, %v295
        %v305 = vmul.f32 %v227, %v299
        %v306 = vmul.f32 %v228, %v295
        %v307 = vmul.f32 %v229, %v299
        %v308 = vmul.f32 %v230, %v295
        %v309 = vmul.f32 %v231, %v299
        %v310 = vmul.f32 %v232, %v295
        %v311 = vmul.f32 %v233, %v299
        %v312 = vmul.f32 %v234, %v295
        %v313 = vmul.f32 %v235, %v299
        %v314 = vmul.f32 %v236, %v295
        %v315 = vmul.f32 %v237, %v299
        %v316 = vmul.f32 %v238, %v295
        %v317 = vmul.f32 %v239, %v299
        %v318 = vmul.f32 %v240, %v295
        %v319 = vmul.f32 %v241, %v299
        %v320 = vmul.f32 %v242, %v295
        %v321 = vmul.f32 %v243, %v299
        %v322 = vmul.f32 %v244, %v295
        %v323 = vmul.f32 %v245, %v299
        %v324 = vmul.f32 %v246, %v295
        %v325 = vmul.f32 %v247, %v299
        %v326 = vmul.f32 %v248, %v295
        %v327 = vmul.f32 %v249, %v299
        %v328 = vmul.f32 %v250, %v295
        %v329 = vmul.f32 %v251, %v299
        %v330 = vmul.f32 %v252, %v295
        %v331 = vmul.f32 %v253, %v299
        %v332 = vmul.f32 %v254, %v295
        %v333 = vmul.f32 %v255, %v299
        %v334 = vmul.f32 %v256, %v295
        %v335 = vmul.f32 %v257, %v299
        %v336 = vmul.f32 %v258, %v295
        %v337 = vmul.f32 %v259, %v299
        %v338 = vmul.f32 %v260, %v295
        %v339 = vmul.f32 %v261, %v299
        %v340 = vmul.f32 %v262, %v295
        %v341 = vmul.f32 %v263, %v299
        %v342 = vmul.f32 %v264, %v295
        %v343 = vmul.f32 %v265, %v299
        %v344 = vmul.f32 %v266, %v295
        %v345 = vmul.f32 %v267, %v299
        %v346 = vmul.f32 %v268, %v295
        %v347 = vmul.f32 %v269, %v299
        %v348 = vmul.f32 %v270, %v295
        %v349 = vmul.f32 %v271, %v299
        %v350 = vmul.f32 %v272, %v295
        %v351 = vmul.f32 %v273, %v299
        %v352 = vmul.f32 %v274, %v295
        %v353 = vmul.f32 %v275, %v299
        %v354 = vmul.f32 %v276, %v295
        %v355 = vmul.f32 %v277, %v299
        %v356 = vmul.f32 %v278, %v295
        %v357 = vmul.f32 %v279, %v299
        %v358 = vmul.f32 %v280, %v295
        %v359 = vmul.f32 %v281, %v299
        %v360 = vmul.f32 %v282, %v295
        %v361 = vmul.f32 %v283, %v299
        %v362 = vmul.f32 %v284, %v295
        %v363 = vmul.f32 %v285, %v299
        %v364 = vmul.f32 %v286, %v295
        %v365 = vmul.f32 %v287, %v299
        %v367 = vlaneseq
        %v368 = vshrl.u32 %v367, 7
        %v369 = vsub.s32 0, %v368
        %v370 = vrot.slane %v290, %v369
        %v371 = vlaneseq
        %v372 = vshrl.u32 %v371, 7
        %v373 = vsub.s32 1, %v372
        %v374 = vrot.slane %v290, %v373
        %v377 = vadd.f32 %v302, %v370
        %v378 = vadd.f32 %v303, %v374
        %v379 = vadd.f32 %v304, %v370
        %v380 = vadd.f32 %v305, %v374
        %v381 = vadd.f32 %v306, %v370
        %v382 = vadd.f32 %v307, %v374
        %v383 = vadd.f32 %v308, %v370
        %v384 = vadd.f32 %v309, %v374
        %v385 = vadd.f32 %v310, %v370
        %v386 = vadd.f32 %v311, %v374
        %v387 = vadd.f32 %v312, %v370
        %v388 = vadd.f32 %v313, %v374
        %v389 = vadd.f32 %v314, %v370
        %v390 = vadd.f32 %v315, %v374
        %v391 = vadd.f32 %v316, %v370
        %v392 = vadd.f32 %v317, %v374
        %v393 = vadd.f32 %v318, %v370
        %v394 = vadd.f32 %v319, %v374
        %v395 = vadd.f32 %v320, %v370
        %v396 = vadd.f32 %v321, %v374
        %v397 = vadd.f32 %v322, %v370
        %v398 = vadd.f32 %v323, %v374
        %v399 = vadd.f32 %v324, %v370
        %v400 = vadd.f32 %v325, %v374
        %v401 = vadd.f32 %v326, %v370
        %v402 = vadd.f32 %v327, %v374
        %v403 = vadd.f32 %v328, %v370
        %v404 = vadd.f32 %v329, %v374
        %v405 = vadd.f32 %v330, %v370
        %v406 = vadd.f32 %v331, %v374
        %v407 = vadd.f32 %v332, %v370
        %v408 = vadd.f32 %v333, %v374
        %v409 = vadd.f32 %v334, %v370
        %v410 = vadd.f32 %v335, %v374
        %v411 = vadd.f32 %v336, %v370
        %v412 = vadd.f32 %v337, %v374
        %v413 = vadd.f32 %v338, %v370
        %v414 = vadd.f32 %v339, %v374
        %v415 = vadd.f32 %v340, %v370
        %v416 = vadd.f32 %v341, %v374
        %v417 = vadd.f32 %v342, %v370
        %v418 = vadd.f32 %v343, %v374
        %v419 = vadd.f32 %v344, %v370
        %v420 = vadd.f32 %v345, %v374
        %v421 = vadd.f32 %v346, %v370
        %v422 = vadd.f32 %v347, %v374
        %v423 = vadd.f32 %v348, %v370
        %v424 = vadd.f32 %v349, %v374
        %v425 = vadd.f32 %v350, %v370
        %v426 = vadd.f32 %v351, %v374
        %v427 = vadd.f32 %v352, %v370
        %v428 = vadd.f32 %v353, %v374
        %v429 = vadd.f32 %v354, %v370
        %v430 = vadd.f32 %v355, %v374
        %v431 = vadd.f32 %v356, %v370
        %v432 = vadd.f32 %v357, %v374
        %v433 = vadd.f32 %v358, %v370
        %v434 = vadd.f32 %v359, %v374
        %v435 = vadd.f32 %v360, %v370
        %v436 = vadd.f32 %v361, %v374
        %v437 = vadd.f32 %v362, %v370
        %v438 = vadd.f32 %v363, %v374
        %v439 = vadd.f32 %v364, %v370
        %v440 = vadd.f32 %v365, %v374
        %441 = vst [vmem:[%s208] sm:$0xff] %v377
        %442 = vst [vmem:[%s208 + $0x8] sm:$0xff] %v378
        %443 = vst [vmem:[%s208 + $0x10] sm:$0xff] %v379
        %444 = vst [vmem:[%s208 + $0x18] sm:$0xff] %v380
        %445 = vst [vmem:[%s208 + $0x20] sm:$0xff] %v381
        %446 = vst [vmem:[%s208 + $0x28] sm:$0xff] %v382
        %447 = vst [vmem:[%s208 + $0x30] sm:$0xff] %v383
        %448 = vst [vmem:[%s208 + $0x38] sm:$0xff] %v384
        %449 = vst [vmem:[%s208 + $0x40] sm:$0xff] %v385
        %450 = vst [vmem:[%s208 + $0x48] sm:$0xff] %v386
        %451 = vst [vmem:[%s208 + $0x50] sm:$0xff] %v387
        %452 = vst [vmem:[%s208 + $0x58] sm:$0xff] %v388
        %453 = vst [vmem:[%s208 + $0x60] sm:$0xff] %v389
        %454 = vst [vmem:[%s208 + $0x68] sm:$0xff] %v390
        %455 = vst [vmem:[%s208 + $0x70] sm:$0xff] %v391
        %456 = vst [vmem:[%s208 + $0x78] sm:$0xff] %v392
        %457 = vst [vmem:[%s208 + $0x80] sm:$0xff] %v393
        %458 = vst [vmem:[%s208 + $0x88] sm:$0xff] %v394
        %459 = vst [vmem:[%s208 + $0x90] sm:$0xff] %v395
        %460 = vst [vmem:[%s208 + $0x98] sm:$0xff] %v396
        %461 = vst [vmem:[%s208 + $0xa0] sm:$0xff] %v397
        %462 = vst [vmem:[%s208 + $0xa8] sm:$0xff] %v398
        %463 = vst [vmem:[%s208 + $0xb0] sm:$0xff] %v399
        %464 = vst [vmem:[%s208 + $0xb8] sm:$0xff] %v400
        %465 = vst [vmem:[%s208 + $0xc0] sm:$0xff] %v401
        %466 = vst [vmem:[%s208 + $0xc8] sm:$0xff] %v402
        %467 = vst [vmem:[%s208 + $0xd0] sm:$0xff] %v403
        %468 = vst [vmem:[%s208 + $0xd8] sm:$0xff] %v404
        %469 = vst [vmem:[%s208 + $0xe0] sm:$0xff] %v405
        %470 = vst [vmem:[%s208 + $0xe8] sm:$0xff] %v406
        %471 = vst [vmem:[%s208 + $0xf0] sm:$0xff] %v407
        %472 = vst [vmem:[%s208 + $0xf8] sm:$0xff] %v408
        %473 = vst [vmem:[%s208 + $0x100] sm:$0xff] %v409
        %474 = vst [vmem:[%s208 + $0x108] sm:$0xff] %v410
        %475 = vst [vmem:[%s208 + $0x110] sm:$0xff] %v411
        %476 = vst [vmem:[%s208 + $0x118] sm:$0xff] %v412
        %477 = vst [vmem:[%s208 + $0x120] sm:$0xff] %v413
        %478 = vst [vmem:[%s208 + $0x128] sm:$0xff] %v414
        %479 = vst [vmem:[%s208 + $0x130] sm:$0xff] %v415
        %480 = vst [vmem:[%s208 + $0x138] sm:$0xff] %v416
        %481 = vst [vmem:[%s208 + $0x140] sm:$0xff] %v417
        %482 = vst [vmem:[%s208 + $0x148] sm:$0xff] %v418
        %483 = vst [vmem:[%s208 + $0x150] sm:$0xff] %v419
        %484 = vst [vmem:[%s208 + $0x158] sm:$0xff] %v420
        %485 = vst [vmem:[%s208 + $0x160] sm:$0xff] %v421
        %486 = vst [vmem:[%s208 + $0x168] sm:$0xff] %v422
        %487 = vst [vmem:[%s208 + $0x170] sm:$0xff] %v423
        %488 = vst [vmem:[%s208 + $0x178] sm:$0xff] %v424
        %489 = vst [vmem:[%s208 + $0x180] sm:$0xff] %v425
        %490 = vst [vmem:[%s208 + $0x188] sm:$0xff] %v426
        %491 = vst [vmem:[%s208 + $0x190] sm:$0xff] %v427
        %492 = vst [vmem:[%s208 + $0x198] sm:$0xff] %v428
        %493 = vst [vmem:[%s208 + $0x1a0] sm:$0xff] %v429
        %494 = vst [vmem:[%s208 + $0x1a8] sm:$0xff] %v430
        %495 = vst [vmem:[%s208 + $0x1b0] sm:$0xff] %v431
        %496 = vst [vmem:[%s208 + $0x1b8] sm:$0xff] %v432
        %497 = vst [vmem:[%s208 + $0x1c0] sm:$0xff] %v433
        %498 = vst [vmem:[%s208 + $0x1c8] sm:$0xff] %v434
        %499 = vst [vmem:[%s208 + $0x1d0] sm:$0xff] %v435
        %500 = vst [vmem:[%s208 + $0x1d8] sm:$0xff] %v436
        %501 = vst [vmem:[%s208 + $0x1e0] sm:$0xff] %v437
        %502 = vst [vmem:[%s208 + $0x1e8] sm:$0xff] %v438
        %503 = vst [vmem:[%s208 + $0x1f0] sm:$0xff] %v439
        %504 = vst [vmem:[%s208 + $0x1f8] sm:$0xff] %v440
        %s505 = sand.u32 %s96, 1
        %s506 = scalar_lea.sflag [#allocation4], %s505
        %s507 = sand.u32 %s96, 1
        %s508 = smul.addr %s507, 512
        %s509 = scalar_lea.vmem [#allocation7], %s508
        // Predicated region
        $region37: #{tpu_custom_call.1} parent=27 // pred_check
          %p510 = pneg %p106
        $region38: #{tpu_custom_call.1} parent=27 // pred_check_branch
          %512 = sbr.rel (%p510) target = $region40
        $region39: #{tpu_custom_call.1} parent=27 // pred_region
          %s513 = smul.u32 32, %s24
          %s514 = smul.u32 2, %s25
          %s515 = ssub.s32 63, %s513
          %p516 = scmp.lt.s32.totalorder %s515, 32
          %s517 = scalar_select %p516, %s515, 32
          %s518 = smul.u32 128, %s517
          %s519 = smul.u32 %s518, 2
          %s521 = ssub.s32 8192, %s519
          %522 = vsyncadd %s506, %s521
          %p523 = scmp.ne.s32.totalorder 0, %s519
          %s524 = smul.addr %s513, 2
          %s525 = sadd.s32 %s514, %s524
          %s526 = smul.addr %s525, 128
          %s527 = scalar_lea.hbm %s2, %s526
          %s528 = smul.u32 16, %s517
          %s529 = sshll.u32 %s509, 4
          %s530 = int_to_ptr.vmem [resolvable:$true] %s529
          %s531 = sshll.u32 %s528, 4
          %535 = dma.vmem_to_hbm [thread:$0]  (%p523), %s530, %s531, %s527, %s506, 256, 256, 16
        $region40: #{tpu_custom_call.1} parent=27 // pred_fallthru
          _
      $region28: #{tpu_custom_call.1} parent=5 // pred_fallthru
        _
      %p536 = scmp.le.s32.totalorder 2, %s15
      // Predicated region
      $region41: #{tpu_custom_call.1} parent=5 // pred_check
        %p537 = pneg %p536
      $region42: #{tpu_custom_call.1} parent=5 // pred_check_branch
        %539 = sbr.rel (%p537) target = $region44
      $region43: #{tpu_custom_call.1} parent=5 // pred_region
        %s540 = ssub.s32 %s15, 2
        // Predicated region
        $region45: #{tpu_custom_call.1} parent=43 // pred_check
          %p541 = pneg %p112
        $region46: #{tpu_custom_call.1} parent=43 // pred_check_branch
          %543 = sbr.rel (%p541) target = $region48
        $region47: #{tpu_custom_call.1} parent=43 // pred_region
          %s544 = sand.u32 %s97, 1
          %s545 = scalar_lea.sflag [#allocation4], %s544
          %s546 = sand.u32 %s97, 1
          %s547 = smul.addr %s546, 512
          %s548 = scalar_lea.vmem [#allocation7], %s547
          %549 = dma.done %s545, 8192
        $region48: #{tpu_custom_call.1} parent=43 // pred_fallthru
          _
      $region44: #{tpu_custom_call.1} parent=5 // pred_fallthru
        _
    $region6: #{tpu_custom_call.1} parent=1 // loop_footer
      %s19 = sadd.s32 1, %s15
    $region7: #{tpu_custom_call.1} parent=1 // loop_footer_branch
      %14 = sbr.rel target = $region3
    $region8: #{tpu_custom_call.1} parent=1 // loop_exit
      _
    %550 = vsyncpa [#allocation3], 1
    %s551 = scalar_lea.sflag [#allocation3], 1
    %552 = vsyncpa %s551, 1
    %553 = vsyncpa [#allocation6], 1
    %554 = vsyncpa [#allocation4], 1
    %s555 = scalar_lea.sflag [#allocation4], 1
    %556 = vsyncpa %s555, 1

</llo_original>
